<compile_context>
chip_gen: v5e
topology: v5e:2x2
jax: 0.10.0
libtpu: 0.0.40
codegen_flags: <defaults>
</compile_context>

<pallas_src>
import jax
import jax.numpy as jnp
from jax.experimental import pallas as pl
from jax.experimental.pallas import tpu as pltpu


def _round_up(n, m):
    return ((n + m - 1) // m) * m


def _hardswish(x):
    # torch.nn.Hardswish: x * clamp(x + 3, 0, 6) / 6
    return x * jnp.clip(x + 3.0, 0.0, 6.0) * (1.0 / 6.0)


def actor_ddpg_kernel(x_ref,
                      w1_ref, b1_ref, w2_ref, b2_ref,
                      w3_ref, b3_ref, w4_ref, b4_ref,
                      noise_ref, out_ref):
    """One batch tile of the full MLP. bf16 operands, f32 MXU accumulation."""
    x = x_ref[...].astype(jnp.bfloat16)

    # Layer 1: Linear + ReLU
    h = jnp.dot(x, w1_ref[...], preferred_element_type=jnp.float32) + b1_ref[...]
    h = jnp.maximum(h, 0.0)

    # Layer 2: Linear + ReLU
    h = jnp.dot(h.astype(jnp.bfloat16), w2_ref[...],
                preferred_element_type=jnp.float32) + b2_ref[...]
    h = jnp.maximum(h, 0.0)

    # Layer 3: Linear + Hardswish
    h = jnp.dot(h.astype(jnp.bfloat16), w3_ref[...],
                preferred_element_type=jnp.float32) + b3_ref[...]
    h = _hardswish(h)

    # Layer 4: Linear + Tanh
    a = jnp.dot(h.astype(jnp.bfloat16), w4_ref[...],
                preferred_element_type=jnp.float32) + b4_ref[...]
    a = jnp.tanh(a)

    # noise_ref already holds clamp(rand * noise_std, -0.5, 0.5) (zeros if std==0)
    out_ref[...] = jnp.clip(a + noise_ref[...], -1.0, 1.0)


def actor_ddpg_forward(state, params, noise_std=0.0, seed=0, batch_tile=256):
    """state: (B, state_dim) f32. params: w1..w4 as (in,out), b1..b4 as (1,out)."""
    state = jnp.asarray(state, jnp.float32)
    B, state_dim = state.shape
    mid_dim = params["w1"].shape[1]
    action_dim = params["w4"].shape[1]

    act_pad = _round_up(action_dim, 128)          # lane-dense output slab
    batch_tile = _round_up(batch_tile, 8)
    tb = min(batch_tile, _round_up(B, 8))         # sublane-aligned batch tile
    b_pad = _round_up(B, tb)
    grid = b_pad // tb

    # Pad batch rows; pad last layer out to act_pad lanes; cast weights to bf16.
    state_p = jnp.pad(state, ((0, b_pad - B), (0, 0)))
    w1 = params["w1"].astype(jnp.bfloat16)
    w2 = params["w2"].astype(jnp.bfloat16)
    w3 = params["w3"].astype(jnp.bfloat16)
    w4 = jnp.pad(params["w4"].astype(jnp.bfloat16),
                 ((0, 0), (0, act_pad - action_dim)))
    b1 = params["b1"].reshape(1, mid_dim).astype(jnp.float32)
    b2 = params["b2"].reshape(1, mid_dim).astype(jnp.float32)
    b3 = params["b3"].reshape(1, mid_dim).astype(jnp.float32)
    b4 = jnp.pad(params["b4"].reshape(1, action_dim).astype(jnp.float32),
                 ((0, 0), (0, act_pad - action_dim)))

    # torch.rand_like(action) * noise_std, clamped; host-side jax.random since
    # pltpu.prng_* is Mosaic-only (no interpret/CPU lowering).
    if noise_std:
        u = jax.random.uniform(jax.random.PRNGKey(seed), (b_pad, act_pad),
                               jnp.float32)
        noise = jnp.clip(u * jnp.float32(noise_std), -0.5, 0.5)
    else:
        noise = jnp.zeros((b_pad, act_pad), jnp.float32)

    row = lambda i: (i, 0)   # batch-tiled operands
    rep = lambda i: (0, 0)   # weights/biases: resident in VMEM across steps

    out = pl.pallas_call(
        actor_ddpg_kernel,
        out_shape=jax.ShapeDtypeStruct((b_pad, act_pad), jnp.float32),
        grid=(grid,),
        in_specs=[
            pl.BlockSpec((tb, state_dim), row),        # state tile
            pl.BlockSpec((state_dim, mid_dim), rep),   # w1
            pl.BlockSpec((1, mid_dim), rep),           # b1
            pl.BlockSpec((mid_dim, mid_dim), rep),     # w2
            pl.BlockSpec((1, mid_dim), rep),           # b2
            pl.BlockSpec((mid_dim, mid_dim), rep),     # w3
            pl.BlockSpec((1, mid_dim), rep),           # b3
            pl.BlockSpec((mid_dim, act_pad), rep),     # w4 (padded)
            pl.BlockSpec((1, act_pad), rep),           # b4 (padded)
            pl.BlockSpec((tb, act_pad), row),          # noise tile
        ],
        out_specs=pl.BlockSpec((tb, act_pad), row),
        compiler_params=pltpu.CompilerParams(
            dimension_semantics=("parallel",)),
    )(state_p, w1, b1, w2, b2, w3, b3, w4, b4, noise)

    return out[:B, :action_dim]


def init_params(key, state_dim, action_dim, mid_dim=256):
    """PyTorch-Linear-style init: U(-1/sqrt(fan_in), 1/sqrt(fan_in))."""
    dims = [(state_dim, mid_dim), (mid_dim, mid_dim),
            (mid_dim, mid_dim), (mid_dim, action_dim)]
    params = {}
    for i, (fin, fout) in enumerate(dims, start=1):
        key, kw, kb = jax.random.split(key, 3)
        bound = 1.0 / (fin ** 0.5)
        params[f"w{i}"] = jax.random.uniform(
            kw, (fin, fout), jnp.float32, -bound, bound)
        params[f"b{i}"] = jax.random.uniform(
            kb, (1, fout), jnp.float32, -bound, bound)
    return params


def actor_ddpg_ref(state, params):
    """Pure-JAX f32 reference (noise_std = 0 path)."""
    h = jnp.maximum(state @ params["w1"] + params["b1"], 0.0)
    h = jnp.maximum(h @ params["w2"] + params["b2"], 0.0)
    h = h @ params["w3"] + params["b3"]
    h = h * jnp.clip(h + 3.0, 0.0, 6.0) / 6.0
    a = jnp.tanh(h @ params["w4"] + params["b4"])
    return jnp.clip(a, -1.0, 1.0)


if __name__ == "__main__":
    B, STATE_DIM, ACTION_DIM, MID_DIM = 2, 16, 4, 256

    key = jax.random.PRNGKey(0)
    key, kp, kx = jax.random.split(key, 3)
    params = init_params(kp, STATE_DIM, ACTION_DIM, MID_DIM)
    state = jax.random.normal(kx, (B, STATE_DIM), jnp.float32)

    # Deterministic path (noise_std = 0); bf16 weights -> loose tolerance vs f32 ref.
    out = jax.block_until_ready(actor_ddpg_forward(state, params, noise_std=0.0))
    ref = actor_ddpg_ref(state, params)
    assert out.shape == (B, ACTION_DIM)
    assert jnp.allclose(out, ref, atol=5e-2, rtol=5e-2), (out, ref)

    # Noisy path (stochastic; check shape + bounds only).
    noisy = jax.block_until_ready(
        actor_ddpg_forward(state, params, noise_std=0.3, seed=42))
    assert noisy.shape == (B, ACTION_DIM)
    assert bool(jnp.all(noisy >= -1.0)) and bool(jnp.all(noisy <= 1.0))

    # Multi-step grid path (batch > tile) to exercise pipelining + padding.
    state_big = jax.random.normal(jax.random.PRNGKey(7), (300, STATE_DIM),
                                  jnp.float32)
    out_big = jax.block_until_ready(
        actor_ddpg_forward(state_big, params, noise_std=0.0, batch_tile=128))
    ref_big = actor_ddpg_ref(state_big, params)
    assert out_big.shape == (300, ACTION_DIM)
    assert jnp.allclose(out_big, ref_big, atol=5e-2, rtol=5e-2)

    print("KERNEL_OK")
</pallas_src>

<mosaic_0001>
module attributes {stable_mosaic.version = 11 : i64} {
  func.func @actor_ddpg_kernel(%arg0: i32, %arg1: memref<8x16xf32, #tpu.memory_space<vmem>>, %arg2: memref<16x256xbf16, #tpu.memory_space<vmem>>, %arg3: memref<1x256xf32, #tpu.memory_space<vmem>>, %arg4: memref<256x256xbf16, #tpu.memory_space<vmem>>, %arg5: memref<1x256xf32, #tpu.memory_space<vmem>>, %arg6: memref<256x256xbf16, #tpu.memory_space<vmem>>, %arg7: memref<1x256xf32, #tpu.memory_space<vmem>>, %arg8: memref<256x128xbf16, #tpu.memory_space<vmem>>, %arg9: memref<1x128xf32, #tpu.memory_space<vmem>>, %arg10: memref<8x128xf32, #tpu.memory_space<vmem>>, %arg11: memref<8x128xf32, #tpu.memory_space<vmem>>) attributes {dimension_semantics = [#tpu.dimension_semantics<parallel>], iteration_bounds = array<i64: 1>, scalar_prefetch = 0 : i64, scratch_operands = 0 : i64, tpu.core_type = #tpu.core_type<tc>, window_params = [{transform_indices = @transform_0, window_bounds = array<i64: 8, 16>}, {pipeline_mode = #tpu.pipeline_mode<synchronous>, transform_indices = @transform_1, window_bounds = array<i64: 16, 256>}, {pipeline_mode = #tpu.pipeline_mode<synchronous>, transform_indices = @transform_2, window_bounds = array<i64: 1, 256>}, {pipeline_mode = #tpu.pipeline_mode<synchronous>, transform_indices = @transform_3, window_bounds = array<i64: 256, 256>}, {pipeline_mode = #tpu.pipeline_mode<synchronous>, transform_indices = @transform_4, window_bounds = array<i64: 1, 256>}, {pipeline_mode = #tpu.pipeline_mode<synchronous>, transform_indices = @transform_5, window_bounds = array<i64: 256, 256>}, {pipeline_mode = #tpu.pipeline_mode<synchronous>, transform_indices = @transform_6, window_bounds = array<i64: 1, 256>}, {pipeline_mode = #tpu.pipeline_mode<synchronous>, transform_indices = @transform_7, window_bounds = array<i64: 256, 128>}, {pipeline_mode = #tpu.pipeline_mode<synchronous>, transform_indices = @transform_8, window_bounds = array<i64: 1, 128>}, {transform_indices = @transform_9, window_bounds = array<i64: 8, 128>}, {transform_indices = @transform_10, window_bounds = array<i64: 8, 128>}]} {
    %c0 = arith.constant 0 : index
    %c0_0 = arith.constant 0 : index
    %0 = vector.load %arg1[%c0, %c0_0] : memref<8x16xf32, #tpu.memory_space<vmem>>, vector<8x16xf32>
    %1 = arith.truncf %0 : vector<8x16xf32> to vector<8x16xbf16>
    %c0_1 = arith.constant 0 : index
    %c0_2 = arith.constant 0 : index
    %2 = vector.load %arg2[%c0_1, %c0_2] : memref<16x256xbf16, #tpu.memory_space<vmem>>, vector<16x256xbf16>
    %cst = arith.constant dense<0.000000e+00> : vector<8x256xf32>
    %3 = tpu.matmul %1, %2, %cst {dimension_numbers = #tpu.dot_dimension_numbers<[1], [0], [0], [1], [0, 0, 1, 1], [], []>} : vector<8x16xbf16>, vector<16x256xbf16>, vector<8x256xf32> -> vector<8x256xf32>
    %c0_3 = arith.constant 0 : index
    %c0_4 = arith.constant 0 : index
    %4 = vector.load %arg3[%c0_3, %c0_4] : memref<1x256xf32, #tpu.memory_space<vmem>>, vector<1x256xf32>
    %5 = vector.broadcast %4 : vector<1x256xf32> to vector<8x256xf32>
    %6 = arith.addf %3, %5 : vector<8x256xf32>
    %cst_5 = arith.constant 0.000000e+00 : f32
    %7 = vector.broadcast %cst_5 : f32 to vector<8x256xf32>
    %8 = arith.maximumf %6, %7 : vector<8x256xf32>
    %9 = arith.truncf %8 : vector<8x256xf32> to vector<8x256xbf16>
    %c0_6 = arith.constant 0 : index
    %c0_7 = arith.constant 0 : index
    %10 = vector.load %arg4[%c0_6, %c0_7] : memref<256x256xbf16, #tpu.memory_space<vmem>>, vector<256x256xbf16>
    %cst_8 = arith.constant dense<0.000000e+00> : vector<8x256xf32>
    %11 = tpu.matmul %9, %10, %cst_8 {dimension_numbers = #tpu.dot_dimension_numbers<[1], [0], [0], [1], [0, 0, 1, 1], [], []>} : vector<8x256xbf16>, vector<256x256xbf16>, vector<8x256xf32> -> vector<8x256xf32>
    %c0_9 = arith.constant 0 : index
    %c0_10 = arith.constant 0 : index
    %12 = vector.load %arg5[%c0_9, %c0_10] : memref<1x256xf32, #tpu.memory_space<vmem>>, vector<1x256xf32>
    %13 = vector.broadcast %12 : vector<1x256xf32> to vector<8x256xf32>
    %14 = arith.addf %11, %13 : vector<8x256xf32>
    %cst_11 = arith.constant 0.000000e+00 : f32
    %15 = vector.broadcast %cst_11 : f32 to vector<8x256xf32>
    %16 = arith.maximumf %14, %15 : vector<8x256xf32>
    %17 = arith.truncf %16 : vector<8x256xf32> to vector<8x256xbf16>
    %c0_12 = arith.constant 0 : index
    %c0_13 = arith.constant 0 : index
    %18 = vector.load %arg6[%c0_12, %c0_13] : memref<256x256xbf16, #tpu.memory_space<vmem>>, vector<256x256xbf16>
    %cst_14 = arith.constant dense<0.000000e+00> : vector<8x256xf32>
    %19 = tpu.matmul %17, %18, %cst_14 {dimension_numbers = #tpu.dot_dimension_numbers<[1], [0], [0], [1], [0, 0, 1, 1], [], []>} : vector<8x256xbf16>, vector<256x256xbf16>, vector<8x256xf32> -> vector<8x256xf32>
    %c0_15 = arith.constant 0 : index
    %c0_16 = arith.constant 0 : index
    %20 = vector.load %arg7[%c0_15, %c0_16] : memref<1x256xf32, #tpu.memory_space<vmem>>, vector<1x256xf32>
    %21 = vector.broadcast %20 : vector<1x256xf32> to vector<8x256xf32>
    %22 = arith.addf %19, %21 : vector<8x256xf32>
    %cst_17 = arith.constant 3.000000e+00 : f32
    %23 = vector.broadcast %cst_17 : f32 to vector<8x256xf32>
    %24 = arith.addf %22, %23 : vector<8x256xf32>
    %cst_18 = arith.constant 0.000000e+00 : f32
    %cst_19 = arith.constant 6.000000e+00 : f32
    %25 = vector.broadcast %cst_18 : f32 to vector<8x256xf32>
    %26 = arith.maximumf %25, %24 : vector<8x256xf32>
    %27 = vector.broadcast %cst_19 : f32 to vector<8x256xf32>
    %28 = arith.minimumf %27, %26 : vector<8x256xf32>
    %29 = arith.mulf %22, %28 : vector<8x256xf32>
    %cst_20 = arith.constant 0.166666672 : f32
    %30 = vector.broadcast %cst_20 : f32 to vector<8x256xf32>
    %31 = arith.mulf %29, %30 : vector<8x256xf32>
    %32 = arith.truncf %31 : vector<8x256xf32> to vector<8x256xbf16>
    %c0_21 = arith.constant 0 : index
    %c0_22 = arith.constant 0 : index
    %33 = vector.load %arg8[%c0_21, %c0_22] : memref<256x128xbf16, #tpu.memory_space<vmem>>, vector<256x128xbf16>
    %cst_23 = arith.constant dense<0.000000e+00> : vector<8x128xf32>
    %34 = tpu.matmul %32, %33, %cst_23 {dimension_numbers = #tpu.dot_dimension_numbers<[1], [0], [0], [1], [0, 0, 1, 1], [], []>} : vector<8x256xbf16>, vector<256x128xbf16>, vector<8x128xf32> -> vector<8x128xf32>
    %c0_24 = arith.constant 0 : index
    %c0_25 = arith.constant 0 : index
    %35 = vector.load %arg9[%c0_24, %c0_25] : memref<1x128xf32, #tpu.memory_space<vmem>>, vector<1x128xf32>
    %36 = vector.broadcast %35 : vector<1x128xf32> to vector<8x128xf32>
    %37 = arith.addf %34, %36 : vector<8x128xf32>
    %38 = math.tanh %37 : vector<8x128xf32>
    %c0_26 = arith.constant 0 : index
    %c0_27 = arith.constant 0 : index
    %39 = vector.load %arg10[%c0_26, %c0_27] : memref<8x128xf32, #tpu.memory_space<vmem>>, vector<8x128xf32>
    %40 = arith.addf %38, %39 : vector<8x128xf32>
    %cst_28 = arith.constant -1.000000e+00 : f32
    %cst_29 = arith.constant 1.000000e+00 : f32
    %41 = vector.broadcast %cst_28 : f32 to vector<8x128xf32>
    %42 = arith.maximumf %41, %40 : vector<8x128xf32>
    %43 = vector.broadcast %cst_29 : f32 to vector<8x128xf32>
    %44 = arith.minimumf %43, %42 : vector<8x128xf32>
    %c0_30 = arith.constant 0 : index
    %c0_31 = arith.constant 0 : index
    %45 = vector.load %arg11[%c0_30, %c0_31] : memref<8x128xf32, #tpu.memory_space<vmem>>, vector<8x128xf32>
    tpu.vector_store %arg11[%c0_30, %c0_31], %44 {strides = array<i32>} : memref<8x128xf32, #tpu.memory_space<vmem>>, vector<8x128xf32>,
    return
  }
  func.func @transform_0(%arg0: i32) -> (i32, i32) {
    %c0_i32 = arith.constant 0 : i32
    %c0_i32_0 = arith.constant 0 : i32
    return %arg0, %c0_i32 : i32, i32
  }
  func.func @transform_1(%arg0: i32) -> (i32, i32) {
    %c0_i32 = arith.constant 0 : i32
    %c0_i32_0 = arith.constant 0 : i32
    %c0_i32_1 = arith.constant 0 : i32
    return %c0_i32, %c0_i32_0 : i32, i32
  }
  func.func @transform_2(%arg0: i32) -> (i32, i32) {
    %c0_i32 = arith.constant 0 : i32
    %c0_i32_0 = arith.constant 0 : i32
    %c0_i32_1 = arith.constant 0 : i32
    return %c0_i32, %c0_i32_0 : i32, i32
  }
  func.func @transform_3(%arg0: i32) -> (i32, i32) {
    %c0_i32 = arith.constant 0 : i32
    %c0_i32_0 = arith.constant 0 : i32
    %c0_i32_1 = arith.constant 0 : i32
    return %c0_i32, %c0_i32_0 : i32, i32
  }
  func.func @transform_4(%arg0: i32) -> (i32, i32) {
    %c0_i32 = arith.constant 0 : i32
    %c0_i32_0 = arith.constant 0 : i32
    %c0_i32_1 = arith.constant 0 : i32
    return %c0_i32, %c0_i32_0 : i32, i32
  }
  func.func @transform_5(%arg0: i32) -> (i32, i32) {
    %c0_i32 = arith.constant 0 : i32
    %c0_i32_0 = arith.constant 0 : i32
    %c0_i32_1 = arith.constant 0 : i32
    return %c0_i32, %c0_i32_0 : i32, i32
  }
  func.func @transform_6(%arg0: i32) -> (i32, i32) {
    %c0_i32 = arith.constant 0 : i32
    %c0_i32_0 = arith.constant 0 : i32
    %c0_i32_1 = arith.constant 0 : i32
    return %c0_i32, %c0_i32_0 : i32, i32
  }
  func.func @transform_7(%arg0: i32) -> (i32, i32) {
    %c0_i32 = arith.constant 0 : i32
    %c0_i32_0 = arith.constant 0 : i32
    %c0_i32_1 = arith.constant 0 : i32
    return %c0_i32, %c0_i32_0 : i32, i32
  }
  func.func @transform_8(%arg0: i32) -> (i32, i32) {
    %c0_i32 = arith.constant 0 : i32
    %c0_i32_0 = arith.constant 0 : i32
    %c0_i32_1 = arith.constant 0 : i32
    return %c0_i32, %c0_i32_0 : i32, i32
  }
  func.func @transform_9(%arg0: i32) -> (i32, i32) {
    %c0_i32 = arith.constant 0 : i32
    %c0_i32_0 = arith.constant 0 : i32
    return %arg0, %c0_i32 : i32, i32
  }
  func.func @transform_10(%arg0: i32) -> (i32, i32) {
    %c0_i32 = arith.constant 0 : i32
    %c0_i32_0 = arith.constant 0 : i32
    return %arg0, %c0_i32 : i32, i32
  }
}

</mosaic_0001>

<llo_original>
// kernel: tpu_custom_call.1
$region0: #{tpu_custom_call.1}
  #allocation0 [shape = 'u32[]', space=smem, size = 0x4, offset = 0x4, fixed_abs, tag = 'smem constant byte address 0x4 - core index']
  #allocation1 [shape = 'u32[72,128]{1,0:T(1,128)}', space=vmem, size = 0x9000, scoped, tag = 'internal scratch']
  %s0 = inlined_call_operand.hbm [shape: f32[8,16], index: 0, kind: input, shape index: {}]
  %s1 = inlined_call_operand.hbm [shape: bf16[16,256], index: 1, kind: input, shape index: {}]
  %s2 = inlined_call_operand.hbm [shape: f32[1,256], index: 2, kind: input, shape index: {}]
  %s3 = inlined_call_operand.hbm [shape: bf16[256,256], index: 3, kind: input, shape index: {}]
  %s4 = inlined_call_operand.hbm [shape: f32[1,256], index: 4, kind: input, shape index: {}]
  %s5 = inlined_call_operand.hbm [shape: bf16[256,256], index: 5, kind: input, shape index: {}]
  %s6 = inlined_call_operand.hbm [shape: f32[1,256], index: 6, kind: input, shape index: {}]
  %s7 = inlined_call_operand.hbm [shape: bf16[256,128], index: 7, kind: input, shape index: {}]
  %s8 = inlined_call_operand.hbm [shape: f32[1,128], index: 8, kind: input, shape index: {}]
  %s9 = inlined_call_operand.vmem [shape: f32[8,128], index: 9, kind: input, shape index: {}]
  %s10 = inlined_call_operand.hbm [shape: f32[8,128], index: 10, kind: output, shape index: {}]
  %s11 = sld [smem:[#allocation0]]
  $region86: #{tpu_custom_call.1} parent=0
    _
  %s13 = ssub.s32 1, %s11
  %s14 = scalar_select 0, %s13, %s11
  $region1: #{tpu_custom_call.1} parent=0
    #allocation2 [shape = 'u8[4096]{0}', space=vmem, size = 0x1000, scoped, tag = 'input window, operand 0, single buffered']
    #allocation3 [shape = 's32[1]{0}', space=sflag, size = 0x4, scoped, tag = 'scoped memory for tpu_custom_call.1']
    #allocation4 [shape = 's32[1]{0}', space=sflag, size = 0x4, scoped, tag = 'scoped memory for tpu_custom_call.1']
    #allocation5 [shape = 'u8[8192]{0}', space=vmem, size = 0x2000, scoped, tag = 'input window, operand 1, single buffered']
    #allocation6 [shape = 's32[1]{0}', space=sflag, size = 0x4, scoped, tag = 'scoped memory for tpu_custom_call.1']
    #allocation7 [shape = 'u8[1024]{0}', space=vmem, size = 0x400, scoped, tag = 'input window, operand 2, single buffered']
    #allocation8 [shape = 'u8[131072]{0}', space=vmem, size = 0x20000, scoped, tag = 'input window, operand 3, single buffered']
    #allocation9 [shape = 's32[1]{0}', space=sflag, size = 0x4, scoped, tag = 'scoped memory for tpu_custom_call.1']
    #allocation10 [shape = 'u8[1024]{0}', space=vmem, size = 0x400, scoped, tag = 'input window, operand 4, single buffered']
    #allocation11 [shape = 'u8[131072]{0}', space=vmem, size = 0x20000, scoped, tag = 'input window, operand 5, single buffered']
    #allocation12 [shape = 's32[1]{0}', space=sflag, size = 0x4, scoped, tag = 'scoped memory for tpu_custom_call.1']
    #allocation13 [shape = 'u8[1024]{0}', space=vmem, size = 0x400, scoped, tag = 'input window, operand 6, single buffered']
    #allocation14 [shape = 'u8[65536]{0}', space=vmem, size = 0x10000, scoped, tag = 'input window, operand 7, single buffered']
    #allocation15 [shape = 's32[1]{0}', space=sflag, size = 0x4, scoped, tag = 'scoped memory for tpu_custom_call.1']
    #allocation16 [shape = 'u8[512]{0}', space=vmem, size = 0x400, scoped, tag = 'input window, operand 8, single buffered']
    #allocation17 [shape = 'u8[4096]{0}', space=vmem, size = 0x1000, scoped, tag = 'output window, operand 0, single buffered']
    %15 = vsyncpa [#allocation3], 0
    %16 = vsyncpa [#allocation6], 0
    %17 = vsyncpa [#allocation9], 0
    %18 = vsyncpa [#allocation12], 0
    %19 = vsyncpa [#allocation15], 0
    %20 = vsyncpa [#allocation4], 0
    // Predicated region
    $region2: #{tpu_custom_call.1} parent=1 // pred_check
      _
    $region3: #{tpu_custom_call.1} parent=1 // pred_check_branch
      %22 = sbr.rel (0) target = $region5
    $region4: #{tpu_custom_call.1} parent=1 // pred_region
      %24 = vsyncadd [#allocation3], 0
      %s26 = sshll.u32 %s0, 4
      %s27 = int_to_ptr.hbm [resolvable:$true] %s26
      %s28 = sshll.u32 [#allocation2], 4
      %s29 = int_to_ptr.vmem [resolvable:$true] %s28
      %31 = dma.hbm_to_vmem [thread:$0]  %s27, 128, %s29, [#allocation3]
    $region5: #{tpu_custom_call.1} parent=1 // pred_fallthru
      _
    // Predicated region
    $region6: #{tpu_custom_call.1} parent=1 // pred_check
      _
    $region7: #{tpu_custom_call.1} parent=1 // pred_check_branch
      %33 = sbr.rel (0) target = $region9
    $region8: #{tpu_custom_call.1} parent=1 // pred_region
      %35 = vsyncadd [#allocation6], 0
      %s36 = sshll.u32 %s1, 4
      %s37 = int_to_ptr.hbm [resolvable:$true] %s36
      %s38 = sshll.u32 [#allocation5], 4
      %s39 = int_to_ptr.vmem [resolvable:$true] %s38
      %44 = dma.hbm_to_vmem [thread:$0]  %s37, 256, %s39, [#allocation6], 128, 128, 8
    $region9: #{tpu_custom_call.1} parent=1 // pred_fallthru
      _
    // Predicated region
    $region10: #{tpu_custom_call.1} parent=1 // pred_check
      _
    $region11: #{tpu_custom_call.1} parent=1 // pred_check_branch
      %46 = sbr.rel (0) target = $region13
    $region12: #{tpu_custom_call.1} parent=1 // pred_region
      %48 = vsyncadd [#allocation6], 0
      %s50 = sshll.u32 %s2, 4
      %s51 = int_to_ptr.hbm [resolvable:$true] %s50
      %s52 = sshll.u32 [#allocation7], 4
      %s53 = int_to_ptr.vmem [resolvable:$true] %s52
      %55 = dma.hbm_to_vmem [thread:$0]  %s51, 32, %s53, [#allocation6]
    $region13: #{tpu_custom_call.1} parent=1 // pred_fallthru
      _
    // Predicated region
    $region14: #{tpu_custom_call.1} parent=1 // pred_check
      _
    $region15: #{tpu_custom_call.1} parent=1 // pred_check_branch
      %57 = sbr.rel (0) target = $region17
    $region16: #{tpu_custom_call.1} parent=1 // pred_region
      %59 = vsyncadd [#allocation9], 0
      %s60 = sshll.u32 %s3, 4
      %s61 = int_to_ptr.hbm [resolvable:$true] %s60
      %s62 = sshll.u32 [#allocation8], 4
      %s63 = int_to_ptr.vmem [resolvable:$true] %s62
      %68 = dma.hbm_to_vmem [thread:$0]  %s61, 4096, %s63, [#allocation9], 128, 128, 8
    $region17: #{tpu_custom_call.1} parent=1 // pred_fallthru
      _
    // Predicated region
    $region18: #{tpu_custom_call.1} parent=1 // pred_check
      _
    $region19: #{tpu_custom_call.1} parent=1 // pred_check_branch
      %70 = sbr.rel (0) target = $region21
    $region20: #{tpu_custom_call.1} parent=1 // pred_region
      %72 = vsyncadd [#allocation9], 0
      %s74 = sshll.u32 %s4, 4
      %s75 = int_to_ptr.hbm [resolvable:$true] %s74
      %s76 = sshll.u32 [#allocation10], 4
      %s77 = int_to_ptr.vmem [resolvable:$true] %s76
      %79 = dma.hbm_to_vmem [thread:$0]  %s75, 32, %s77, [#allocation9]
    $region21: #{tpu_custom_call.1} parent=1 // pred_fallthru
      _
    // Predicated region
    $region22: #{tpu_custom_call.1} parent=1 // pred_check
      _
    $region23: #{tpu_custom_call.1} parent=1 // pred_check_branch
      %81 = sbr.rel (0) target = $region25
    $region24: #{tpu_custom_call.1} parent=1 // pred_region
      %83 = vsyncadd [#allocation12], 0
      %s84 = sshll.u32 %s5, 4
      %s85 = int_to_ptr.hbm [resolvable:$true] %s84
      %s86 = sshll.u32 [#allocation11], 4
      %s87 = int_to_ptr.vmem [resolvable:$true] %s86
      %92 = dma.hbm_to_vmem [thread:$0]  %s85, 4096, %s87, [#allocation12], 128, 128, 8
    $region25: #{tpu_custom_call.1} parent=1 // pred_fallthru
      _
    // Predicated region
    $region26: #{tpu_custom_call.1} parent=1 // pred_check
      _
    $region27: #{tpu_custom_call.1} parent=1 // pred_check_branch
      %94 = sbr.rel (0) target = $region29
    $region28: #{tpu_custom_call.1} parent=1 // pred_region
      %96 = vsyncadd [#allocation12], 0
      %s98 = sshll.u32 %s6, 4
      %s99 = int_to_ptr.hbm [resolvable:$true] %s98
      %s100 = sshll.u32 [#allocation13], 4
      %s101 = int_to_ptr.vmem [resolvable:$true] %s100
      %103 = dma.hbm_to_vmem [thread:$0]  %s99, 32, %s101, [#allocation12]
    $region29: #{tpu_custom_call.1} parent=1 // pred_fallthru
      _
    // Predicated region
    $region30: #{tpu_custom_call.1} parent=1 // pred_check
      _
    $region31: #{tpu_custom_call.1} parent=1 // pred_check_branch
      %105 = sbr.rel (0) target = $region33
    $region32: #{tpu_custom_call.1} parent=1 // pred_region
      %107 = vsyncadd [#allocation15], 0
      %s108 = sshll.u32 %s7, 4
      %s109 = int_to_ptr.hbm [resolvable:$true] %s108
      %s110 = sshll.u32 [#allocation14], 4
      %s111 = int_to_ptr.vmem [resolvable:$true] %s110
      %116 = dma.hbm_to_vmem [thread:$0]  %s109, 2048, %s111, [#allocation15], 64, 64, 4
    $region33: #{tpu_custom_call.1} parent=1 // pred_fallthru
      _
    // Predicated region
    $region34: #{tpu_custom_call.1} parent=1 // pred_check
      _
    $region35: #{tpu_custom_call.1} parent=1 // pred_check_branch
      %118 = sbr.rel (0) target = $region37
    $region36: #{tpu_custom_call.1} parent=1 // pred_region
      %120 = vsyncadd [#allocation15], 0
      %s122 = sshll.u32 %s8, 4
      %s123 = int_to_ptr.hbm [resolvable:$true] %s122
      %s124 = sshll.u32 [#allocation16], 4
      %s125 = int_to_ptr.vmem [resolvable:$true] %s124
      %127 = dma.hbm_to_vmem [thread:$0]  %s123, 16, %s125, [#allocation15]
    $region37: #{tpu_custom_call.1} parent=1 // pred_fallthru
      _
    // Predicated region
    $region38: #{tpu_custom_call.1} parent=1 // pred_check
      _
    $region39: #{tpu_custom_call.1} parent=1 // pred_check_branch
      %129 = sbr.rel (0) target = $region41
    $region40: #{tpu_custom_call.1} parent=1 // pred_region
      _
    $region41: #{tpu_custom_call.1} parent=1 // pred_fallthru
      _
    // Predicated region
    $region42: #{tpu_custom_call.1} parent=1 // pred_check
      _
    $region43: #{tpu_custom_call.1} parent=1 // pred_check_branch
      %131 = sbr.rel (0) target = $region45
    $region44: #{tpu_custom_call.1} parent=1 // pred_region
      %133 = dma.done [#allocation3], 128
    $region45: #{tpu_custom_call.1} parent=1 // pred_fallthru
      _
    // Predicated region
    $region46: #{tpu_custom_call.1} parent=1 // pred_check
      _
    $region47: #{tpu_custom_call.1} parent=1 // pred_check_branch
      %135 = sbr.rel (0) target = $region49
    $region48: #{tpu_custom_call.1} parent=1 // pred_region
      %137 = dma.done [#allocation6], 256
    $region49: #{tpu_custom_call.1} parent=1 // pred_fallthru
      _
    // Predicated region
    $region50: #{tpu_custom_call.1} parent=1 // pred_check
      _
    $region51: #{tpu_custom_call.1} parent=1 // pred_check_branch
      %139 = sbr.rel (0) target = $region53
    $region52: #{tpu_custom_call.1} parent=1 // pred_region
      %141 = dma.done [#allocation6], 32
    $region53: #{tpu_custom_call.1} parent=1 // pred_fallthru
      _
    // Predicated region
    $region54: #{tpu_custom_call.1} parent=1 // pred_check
      _
    $region55: #{tpu_custom_call.1} parent=1 // pred_check_branch
      %143 = sbr.rel (0) target = $region57
    $region56: #{tpu_custom_call.1} parent=1 // pred_region
      %145 = dma.done [#allocation9], 4096
    $region57: #{tpu_custom_call.1} parent=1 // pred_fallthru
      _
    // Predicated region
    $region58: #{tpu_custom_call.1} parent=1 // pred_check
      _
    $region59: #{tpu_custom_call.1} parent=1 // pred_check_branch
      %147 = sbr.rel (0) target = $region61
    $region60: #{tpu_custom_call.1} parent=1 // pred_region
      %149 = dma.done [#allocation9], 32
    $region61: #{tpu_custom_call.1} parent=1 // pred_fallthru
      _
    // Predicated region
    $region62: #{tpu_custom_call.1} parent=1 // pred_check
      _
    $region63: #{tpu_custom_call.1} parent=1 // pred_check_branch
      %151 = sbr.rel (0) target = $region65
    $region64: #{tpu_custom_call.1} parent=1 // pred_region
      %153 = dma.done [#allocation12], 4096
    $region65: #{tpu_custom_call.1} parent=1 // pred_fallthru
      _
    // Predicated region
    $region66: #{tpu_custom_call.1} parent=1 // pred_check
      _
    $region67: #{tpu_custom_call.1} parent=1 // pred_check_branch
      %155 = sbr.rel (0) target = $region69
    $region68: #{tpu_custom_call.1} parent=1 // pred_region
      %157 = dma.done [#allocation12], 32
    $region69: #{tpu_custom_call.1} parent=1 // pred_fallthru
      _
    // Predicated region
    $region70: #{tpu_custom_call.1} parent=1 // pred_check
      _
    $region71: #{tpu_custom_call.1} parent=1 // pred_check_branch
      %159 = sbr.rel (0) target = $region73
    $region72: #{tpu_custom_call.1} parent=1 // pred_region
      %161 = dma.done [#allocation15], 2048
    $region73: #{tpu_custom_call.1} parent=1 // pred_fallthru
      _
    // Predicated region
    $region74: #{tpu_custom_call.1} parent=1 // pred_check
      _
    $region75: #{tpu_custom_call.1} parent=1 // pred_check_branch
      %163 = sbr.rel (0) target = $region77
    $region76: #{tpu_custom_call.1} parent=1 // pred_region
      %165 = dma.done [#allocation15], 16
    $region77: #{tpu_custom_call.1} parent=1 // pred_fallthru
      _
    %v167 = vld [vmem:[#allocation2] sm:$0xff]
    %v168 = vpack.c.bf16 %v167, %v167
    %v169 = vld [vmem:[#allocation5] sm:$0xff]
    %v170 = vld [vmem:[#allocation5 + $0x8] sm:$0xff]
    %v171 = vld [vmem:[#allocation7] sm:$0x3]
    %v173 = vperm.slane %v171, 0
    %v174 = vperm.slane %v171, 1
    %v179 = vunpack.c.l.b16 %v169
    %v180 = vunpack.c.h.b16 %v169
    %v181 = vunpack.c.l.b16 %v170
    %v182 = vunpack.c.h.b16 %v170
    %v183 = vpack.c.b16 %v181, %v179
    %v184 = vpack.c.b16 %v182, %v180
    %vm187 = vcmask 130048
    %v189 = vsel %vm187, %v168, 0
    %191 = vmatpush.bf16.msra.mxu0 0
    %192 = vmatpush.bf16.msra.mxu0 0
    %193 = vmatpush.bf16.msra.mxu0 0
    %194 = vmatpush.bf16.msra.mxu0 0
    %195 = vmatpush.bf16.msra.mxu0 0
    %196 = vmatpush.bf16.msra.mxu0 0
    %197 = vmatpush.bf16.msra.mxu0 0
    %198 = vmatpush.bf16.msra.mxu0 %v183
    %199 = vmatmul.bf16.gmra.mxu0 %v189
    %v200 = vpop.f32.mrf.mxu0
    %v201 = vadd.f32 %v173, %v200
    %v202 = vpop.f32.mrf.mxu0
    %203 = vdwg.mxu0
    %204 = vmatpush.bf16.msra.mxu0 0
    %205 = vmatpush.bf16.msra.mxu0 0
    %206 = vmatpush.bf16.msra.mxu0 0
    %207 = vmatpush.bf16.msra.mxu0 0
    %208 = vmatpush.bf16.msra.mxu0 0
    %209 = vmatpush.bf16.msra.mxu0 0
    %210 = vmatpush.bf16.msra.mxu0 0
    %211 = vmatpush.bf16.msra.mxu0 %v184
    %212 = vmatmul.bf16.gmra.mxu0 %v189
    %v213 = vpop.f32.mrf.mxu0
    %v214 = vadd.f32 %v174, %v213
    %v215 = vpop.f32.mrf.mxu0
    %216 = vdwg.mxu0
    %v217 = vmax.f32 %v201, 0.0
    %v218 = vmax.f32 %v214, 0.0
    %v219 = vpack.c.bf16 %v217, %v217
    %v220 = vpack.c.bf16 %v218, %v218
    %v221 = vld [vmem:[#allocation8] sm:$0xff]
    %v222 = vld [vmem:[#allocation8 + $0x8] sm:$0xff]
    %v223 = vld [vmem:[#allocation8 + $0x10] sm:$0xff]
    %v224 = vld [vmem:[#allocation8 + $0x18] sm:$0xff]
    %v225 = vld [vmem:[#allocation8 + $0x20] sm:$0xff]
    %v226 = vld [vmem:[#allocation8 + $0x28] sm:$0xff]
    %v227 = vld [vmem:[#allocation8 + $0x30] sm:$0xff]
    %v228 = vld [vmem:[#allocation8 + $0x38] sm:$0xff]
    %v229 = vld [vmem:[#allocation8 + $0x40] sm:$0xff]
    %v230 = vld [vmem:[#allocation8 + $0x48] sm:$0xff]
    %v231 = vld [vmem:[#allocation8 + $0x50] sm:$0xff]
    %v232 = vld [vmem:[#allocation8 + $0x58] sm:$0xff]
    %v233 = vld [vmem:[#allocation8 + $0x60] sm:$0xff]
    %v234 = vld [vmem:[#allocation8 + $0x68] sm:$0xff]
    %v235 = vld [vmem:[#allocation8 + $0x70] sm:$0xff]
    %v236 = vld [vmem:[#allocation8 + $0x78] sm:$0xff]
    %v237 = vld [vmem:[#allocation8 + $0x80] sm:$0xff]
    %v238 = vld [vmem:[#allocation8 + $0x88] sm:$0xff]
    %v239 = vld [vmem:[#allocation8 + $0x90] sm:$0xff]
    %v240 = vld [vmem:[#allocation8 + $0x98] sm:$0xff]
    %v241 = vld [vmem:[#allocation8 + $0xa0] sm:$0xff]
    %v242 = vld [vmem:[#allocation8 + $0xa8] sm:$0xff]
    %v243 = vld [vmem:[#allocation8 + $0xb0] sm:$0xff]
    %v244 = vld [vmem:[#allocation8 + $0xb8] sm:$0xff]
    %v245 = vld [vmem:[#allocation8 + $0xc0] sm:$0xff]
    %v246 = vld [vmem:[#allocation8 + $0xc8] sm:$0xff]
    %v247 = vld [vmem:[#allocation8 + $0xd0] sm:$0xff]
    %v248 = vld [vmem:[#allocation8 + $0xd8] sm:$0xff]
    %v249 = vld [vmem:[#allocation8 + $0xe0] sm:$0xff]
    %v250 = vld [vmem:[#allocation8 + $0xe8] sm:$0xff]
    %v251 = vld [vmem:[#allocation8 + $0xf0] sm:$0xff]
    %v252 = vld [vmem:[#allocation8 + $0xf8] sm:$0xff]
    %v253 = vld [vmem:[#allocation10] sm:$0x3]
    %v255 = vperm.slane %v253, 0
    %v256 = vperm.slane %v253, 1
    %v291 = vunpack.c.l.b16 %v221
    %v292 = vunpack.c.h.b16 %v221
    %v293 = vunpack.c.l.b16 %v222
    %v294 = vunpack.c.h.b16 %v222
    %v295 = vunpack.c.l.b16 %v223
    %v296 = vunpack.c.h.b16 %v223
    %v297 = vunpack.c.l.b16 %v224
    %v298 = vunpack.c.h.b16 %v224
    %v299 = vunpack.c.l.b16 %v225
    %v300 = vunpack.c.h.b16 %v225
    %v301 = vunpack.c.l.b16 %v226
    %v302 = vunpack.c.h.b16 %v226
    %v303 = vunpack.c.l.b16 %v227
    %v304 = vunpack.c.h.b16 %v227
    %v305 = vunpack.c.l.b16 %v228
    %v306 = vunpack.c.h.b16 %v228
    %v307 = vunpack.c.l.b16 %v229
    %v308 = vunpack.c.h.b16 %v229
    %v309 = vunpack.c.l.b16 %v230
    %v310 = vunpack.c.h.b16 %v230
    %v311 = vunpack.c.l.b16 %v231
    %v312 = vunpack.c.h.b16 %v231
    %v313 = vunpack.c.l.b16 %v232
    %v314 = vunpack.c.h.b16 %v232
    %v315 = vunpack.c.l.b16 %v233
    %v316 = vunpack.c.h.b16 %v233
    %v317 = vunpack.c.l.b16 %v234
    %v318 = vunpack.c.h.b16 %v234
    %v319 = vunpack.c.l.b16 %v235
    %v320 = vunpack.c.h.b16 %v235
    %v321 = vunpack.c.l.b16 %v236
    %v322 = vunpack.c.h.b16 %v236
    %v323 = vunpack.c.l.b16 %v237
    %v324 = vunpack.c.h.b16 %v237
    %v325 = vunpack.c.l.b16 %v238
    %v326 = vunpack.c.h.b16 %v238
    %v327 = vunpack.c.l.b16 %v239
    %v328 = vunpack.c.h.b16 %v239
    %v329 = vunpack.c.l.b16 %v240
    %v330 = vunpack.c.h.b16 %v240
    %v331 = vunpack.c.l.b16 %v241
    %v332 = vunpack.c.h.b16 %v241
    %v333 = vunpack.c.l.b16 %v242
    %v334 = vunpack.c.h.b16 %v242
    %v335 = vunpack.c.l.b16 %v243
    %v336 = vunpack.c.h.b16 %v243
    %v337 = vunpack.c.l.b16 %v244
    %v338 = vunpack.c.h.b16 %v244
    %v339 = vunpack.c.l.b16 %v245
    %v340 = vunpack.c.h.b16 %v245
    %v341 = vunpack.c.l.b16 %v246
    %v342 = vunpack.c.h.b16 %v246
    %v343 = vunpack.c.l.b16 %v247
    %v344 = vunpack.c.h.b16 %v247
    %v345 = vunpack.c.l.b16 %v248
    %v346 = vunpack.c.h.b16 %v248
    %v347 = vunpack.c.l.b16 %v249
    %v348 = vunpack.c.h.b16 %v249
    %v349 = vunpack.c.l.b16 %v250
    %v350 = vunpack.c.h.b16 %v250
    %v351 = vunpack.c.l.b16 %v251
    %v352 = vunpack.c.h.b16 %v251
    %v353 = vunpack.c.l.b16 %v252
    %v354 = vunpack.c.h.b16 %v252
    %v355 = vpack.c.b16 %v293, %v291
    %v356 = vpack.c.b16 %v294, %v292
    %v357 = vpack.c.b16 %v297, %v295
    %v358 = vpack.c.b16 %v298, %v296
    %v359 = vpack.c.b16 %v301, %v299
    %v360 = vpack.c.b16 %v302, %v300
    %v361 = vpack.c.b16 %v305, %v303
    %v362 = vpack.c.b16 %v306, %v304
    %v363 = vpack.c.b16 %v309, %v307
    %v364 = vpack.c.b16 %v310, %v308
    %v365 = vpack.c.b16 %v313, %v311
    %v366 = vpack.c.b16 %v314, %v312
    %v367 = vpack.c.b16 %v317, %v315
    %v368 = vpack.c.b16 %v318, %v316
    %v369 = vpack.c.b16 %v321, %v319
    %v370 = vpack.c.b16 %v322, %v320
    %v371 = vpack.c.b16 %v325, %v323
    %v372 = vpack.c.b16 %v326, %v324
    %v373 = vpack.c.b16 %v329, %v327
    %v374 = vpack.c.b16 %v330, %v328
    %v375 = vpack.c.b16 %v333, %v331
    %v376 = vpack.c.b16 %v334, %v332
    %v377 = vpack.c.b16 %v337, %v335
    %v378 = vpack.c.b16 %v338, %v336
    %v379 = vpack.c.b16 %v341, %v339
    %v380 = vpack.c.b16 %v342, %v340
    %v381 = vpack.c.b16 %v345, %v343
    %v382 = vpack.c.b16 %v346, %v344
    %v383 = vpack.c.b16 %v349, %v347
    %v384 = vpack.c.b16 %v350, %v348
    %v385 = vpack.c.b16 %v353, %v351
    %v386 = vpack.c.b16 %v354, %v352
    %419 = vmatpush.bf16.msra.mxu0 %v369
    %420 = vmatpush.bf16.msra.mxu0 %v367
    %421 = vmatpush.bf16.msra.mxu0 %v365
    %422 = vmatpush.bf16.msra.mxu0 %v363
    %423 = vmatpush.bf16.msra.mxu0 %v361
    %424 = vmatpush.bf16.msra.mxu0 %v359
    %425 = vmatpush.bf16.msra.mxu0 %v357
    %426 = vmatpush.bf16.msra.mxu0 %v355
    %427 = vmatmul.bf16.gmra.mxu0 %v219
    %v428 = vpop.f32.mrf.mxu0
    %v429 = vadd.f32 %v255, %v428
    %v430 = vpop.f32.mrf.mxu0
    %431 = vdwg.mxu0
    %432 = vmatpush.bf16.msra.mxu0 %v385
    %433 = vmatpush.bf16.msra.mxu0 %v383
    %434 = vmatpush.bf16.msra.mxu0 %v381
    %435 = vmatpush.bf16.msra.mxu0 %v379
    %436 = vmatpush.bf16.msra.mxu0 %v377
    %437 = vmatpush.bf16.msra.mxu0 %v375
    %438 = vmatpush.bf16.msra.mxu0 %v373
    %439 = vmatpush.bf16.msra.mxu0 %v371
    %440 = vmatmul.bf16.gmra.mxu0 %v220
    %v441 = vpop.f32.mrf.mxu0
    %v442 = vadd.f32 %v429, %v441
    %v443 = vpop.f32.mrf.mxu0
    %444 = vdwg.mxu0
    %445 = vmatpush.bf16.msra.mxu0 %v370
    %446 = vmatpush.bf16.msra.mxu0 %v368
    %447 = vmatpush.bf16.msra.mxu0 %v366
    %448 = vmatpush.bf16.msra.mxu0 %v364
    %449 = vmatpush.bf16.msra.mxu0 %v362
    %450 = vmatpush.bf16.msra.mxu0 %v360
    %451 = vmatpush.bf16.msra.mxu0 %v358
    %452 = vmatpush.bf16.msra.mxu0 %v356
    %453 = vmatmul.bf16.gmra.mxu0 %v219
    %v454 = vpop.f32.mrf.mxu0
    %v455 = vadd.f32 %v256, %v454
    %v456 = vpop.f32.mrf.mxu0
    %457 = vdwg.mxu0
    %458 = vmatpush.bf16.msra.mxu0 %v386
    %459 = vmatpush.bf16.msra.mxu0 %v384
    %460 = vmatpush.bf16.msra.mxu0 %v382
    %461 = vmatpush.bf16.msra.mxu0 %v380
    %462 = vmatpush.bf16.msra.mxu0 %v378
    %463 = vmatpush.bf16.msra.mxu0 %v376
    %464 = vmatpush.bf16.msra.mxu0 %v374
    %465 = vmatpush.bf16.msra.mxu0 %v372
    %466 = vmatmul.bf16.gmra.mxu0 %v220
    %v467 = vpop.f32.mrf.mxu0
    %v468 = vadd.f32 %v455, %v467
    %v469 = vpop.f32.mrf.mxu0
    %470 = vdwg.mxu0
    %v471 = vmax.f32 %v442, 0.0
    %v472 = vmax.f32 %v468, 0.0
    %v473 = vpack.c.bf16 %v471, %v471
    %v474 = vpack.c.bf16 %v472, %v472
    %v475 = vld [vmem:[#allocation11] sm:$0xff]
    %v476 = vld [vmem:[#allocation11 + $0x8] sm:$0xff]
    %v477 = vld [vmem:[#allocation11 + $0x10] sm:$0xff]
    %v478 = vld [vmem:[#allocation11 + $0x18] sm:$0xff]
    %v479 = vld [vmem:[#allocation11 + $0x20] sm:$0xff]
    %v480 = vld [vmem:[#allocation11 + $0x28] sm:$0xff]
    %v481 = vld [vmem:[#allocation11 + $0x30] sm:$0xff]
    %v482 = vld [vmem:[#allocation11 + $0x38] sm:$0xff]
    %v483 = vld [vmem:[#allocation11 + $0x40] sm:$0xff]
    %v484 = vld [vmem:[#allocation11 + $0x48] sm:$0xff]
    %v485 = vld [vmem:[#allocation11 + $0x50] sm:$0xff]
    %v486 = vld [vmem:[#allocation11 + $0x58] sm:$0xff]
    %v487 = vld [vmem:[#allocation11 + $0x60] sm:$0xff]
    %v488 = vld [vmem:[#allocation11 + $0x68] sm:$0xff]
    %v489 = vld [vmem:[#allocation11 + $0x70] sm:$0xff]
    %v490 = vld [vmem:[#allocation11 + $0x78] sm:$0xff]
    %v491 = vld [vmem:[#allocation11 + $0x80] sm:$0xff]
    %v492 = vld [vmem:[#allocation11 + $0x88] sm:$0xff]
    %v493 = vld [vmem:[#allocation11 + $0x90] sm:$0xff]
    %v494 = vld [vmem:[#allocation11 + $0x98] sm:$0xff]
    %v495 = vld [vmem:[#allocation11 + $0xa0] sm:$0xff]
    %v496 = vld [vmem:[#allocation11 + $0xa8] sm:$0xff]
    %v497 = vld [vmem:[#allocation11 + $0xb0] sm:$0xff]
    %v498 = vld [vmem:[#allocation11 + $0xb8] sm:$0xff]
    %v499 = vld [vmem:[#allocation11 + $0xc0] sm:$0xff]
    %v500 = vld [vmem:[#allocation11 + $0xc8] sm:$0xff]
    %v501 = vld [vmem:[#allocation11 + $0xd0] sm:$0xff]
    %v502 = vld [vmem:[#allocation11 + $0xd8] sm:$0xff]
    %v503 = vld [vmem:[#allocation11 + $0xe0] sm:$0xff]
    %v504 = vld [vmem:[#allocation11 + $0xe8] sm:$0xff]
    %v505 = vld [vmem:[#allocation11 + $0xf0] sm:$0xff]
    %v506 = vld [vmem:[#allocation11 + $0xf8] sm:$0xff]
    %v507 = vld [vmem:[#allocation13] sm:$0x3]
    %v509 = vperm.slane %v507, 0
    %v510 = vperm.slane %v507, 1
    %v545 = vunpack.c.l.b16 %v475
    %v546 = vunpack.c.h.b16 %v475
    %v547 = vunpack.c.l.b16 %v476
    %v548 = vunpack.c.h.b16 %v476
    %v549 = vunpack.c.l.b16 %v477
    %v550 = vunpack.c.h.b16 %v477
    %v551 = vunpack.c.l.b16 %v478
    %v552 = vunpack.c.h.b16 %v478
    %v553 = vunpack.c.l.b16 %v479
    %v554 = vunpack.c.h.b16 %v479
    %v555 = vunpack.c.l.b16 %v480
    %v556 = vunpack.c.h.b16 %v480
    %v557 = vunpack.c.l.b16 %v481
    %v558 = vunpack.c.h.b16 %v481
    %v559 = vunpack.c.l.b16 %v482
    %v560 = vunpack.c.h.b16 %v482
    %v561 = vunpack.c.l.b16 %v483
    %v562 = vunpack.c.h.b16 %v483
    %v563 = vunpack.c.l.b16 %v484
    %v564 = vunpack.c.h.b16 %v484
    %v565 = vunpack.c.l.b16 %v485
    %v566 = vunpack.c.h.b16 %v485
    %v567 = vunpack.c.l.b16 %v486
    %v568 = vunpack.c.h.b16 %v486
    %v569 = vunpack.c.l.b16 %v487
    %v570 = vunpack.c.h.b16 %v487
    %v571 = vunpack.c.l.b16 %v488
    %v572 = vunpack.c.h.b16 %v488
    %v573 = vunpack.c.l.b16 %v489
    %v574 = vunpack.c.h.b16 %v489
    %v575 = vunpack.c.l.b16 %v490
    %v576 = vunpack.c.h.b16 %v490
    %v577 = vunpack.c.l.b16 %v491
    %v578 = vunpack.c.h.b16 %v491
    %v579 = vunpack.c.l.b16 %v492
    %v580 = vunpack.c.h.b16 %v492
    %v581 = vunpack.c.l.b16 %v493
    %v582 = vunpack.c.h.b16 %v493
    %v583 = vunpack.c.l.b16 %v494
    %v584 = vunpack.c.h.b16 %v494
    %v585 = vunpack.c.l.b16 %v495
    %v586 = vunpack.c.h.b16 %v495
    %v587 = vunpack.c.l.b16 %v496
    %v588 = vunpack.c.h.b16 %v496
    %v589 = vunpack.c.l.b16 %v497
    %v590 = vunpack.c.h.b16 %v497
    %v591 = vunpack.c.l.b16 %v498
    %v592 = vunpack.c.h.b16 %v498
    %v593 = vunpack.c.l.b16 %v499
    %v594 = vunpack.c.h.b16 %v499
    %v595 = vunpack.c.l.b16 %v500
    %v596 = vunpack.c.h.b16 %v500
    %v597 = vunpack.c.l.b16 %v501
    %v598 = vunpack.c.h.b16 %v501
    %v599 = vunpack.c.l.b16 %v502
    %v600 = vunpack.c.h.b16 %v502
    %v601 = vunpack.c.l.b16 %v503
    %v602 = vunpack.c.h.b16 %v503
    %v603 = vunpack.c.l.b16 %v504
    %v604 = vunpack.c.h.b16 %v504
    %v605 = vunpack.c.l.b16 %v505
    %v606 = vunpack.c.h.b16 %v505
    %v607 = vunpack.c.l.b16 %v506
    %v608 = vunpack.c.h.b16 %v506
    %v609 = vpack.c.b16 %v547, %v545
    %v610 = vpack.c.b16 %v548, %v546
    %v611 = vpack.c.b16 %v551, %v549
    %v612 = vpack.c.b16 %v552, %v550
    %v613 = vpack.c.b16 %v555, %v553
    %v614 = vpack.c.b16 %v556, %v554
    %v615 = vpack.c.b16 %v559, %v557
    %v616 = vpack.c.b16 %v560, %v558
    %v617 = vpack.c.b16 %v563, %v561
    %v618 = vpack.c.b16 %v564, %v562
    %v619 = vpack.c.b16 %v567, %v565
    %v620 = vpack.c.b16 %v568, %v566
    %v621 = vpack.c.b16 %v571, %v569
    %v622 = vpack.c.b16 %v572, %v570
    %v623 = vpack.c.b16 %v575, %v573
    %v624 = vpack.c.b16 %v576, %v574
    %v625 = vpack.c.b16 %v579, %v577
    %v626 = vpack.c.b16 %v580, %v578
    %v627 = vpack.c.b16 %v583, %v581
    %v628 = vpack.c.b16 %v584, %v582
    %v629 = vpack.c.b16 %v587, %v585
    %v630 = vpack.c.b16 %v588, %v586
    %v631 = vpack.c.b16 %v591, %v589
    %v632 = vpack.c.b16 %v592, %v590
    %v633 = vpack.c.b16 %v595, %v593
    %v634 = vpack.c.b16 %v596, %v594
    %v635 = vpack.c.b16 %v599, %v597
    %v636 = vpack.c.b16 %v600, %v598
    %v637 = vpack.c.b16 %v603, %v601
    %v638 = vpack.c.b16 %v604, %v602
    %v639 = vpack.c.b16 %v607, %v605
    %v640 = vpack.c.b16 %v608, %v606
    %673 = vmatpush.bf16.msra.mxu0 %v623
    %674 = vmatpush.bf16.msra.mxu0 %v621
    %675 = vmatpush.bf16.msra.mxu0 %v619
    %676 = vmatpush.bf16.msra.mxu0 %v617
    %677 = vmatpush.bf16.msra.mxu0 %v615
    %678 = vmatpush.bf16.msra.mxu0 %v613
    %679 = vmatpush.bf16.msra.mxu0 %v611
    %680 = vmatpush.bf16.msra.mxu0 %v609
    %681 = vmatmul.bf16.gmra.mxu0 %v473
    %v682 = vpop.f32.mrf.mxu0
    %v683 = vadd.f32 %v509, %v682
    %v684 = vpop.f32.mrf.mxu0
    %685 = vdwg.mxu0
    %686 = vmatpush.bf16.msra.mxu0 %v639
    %687 = vmatpush.bf16.msra.mxu0 %v637
    %688 = vmatpush.bf16.msra.mxu0 %v635
    %689 = vmatpush.bf16.msra.mxu0 %v633
    %690 = vmatpush.bf16.msra.mxu0 %v631
    %691 = vmatpush.bf16.msra.mxu0 %v629
    %692 = vmatpush.bf16.msra.mxu0 %v627
    %693 = vmatpush.bf16.msra.mxu0 %v625
    %694 = vmatmul.bf16.gmra.mxu0 %v474
    %v695 = vpop.f32.mrf.mxu0
    %v696 = vadd.f32 %v683, %v695
    %v697 = vpop.f32.mrf.mxu0
    %698 = vdwg.mxu0
    %699 = vmatpush.bf16.msra.mxu0 %v624
    %700 = vmatpush.bf16.msra.mxu0 %v622
    %701 = vmatpush.bf16.msra.mxu0 %v620
    %702 = vmatpush.bf16.msra.mxu0 %v618
    %703 = vmatpush.bf16.msra.mxu0 %v616
    %704 = vmatpush.bf16.msra.mxu0 %v614
    %705 = vmatpush.bf16.msra.mxu0 %v612
    %706 = vmatpush.bf16.msra.mxu0 %v610
    %707 = vmatmul.bf16.gmra.mxu0 %v473
    %v708 = vpop.f32.mrf.mxu0
    %v709 = vadd.f32 %v510, %v708
    %v710 = vpop.f32.mrf.mxu0
    %711 = vdwg.mxu0
    %712 = vmatpush.bf16.msra.mxu0 %v640
    %713 = vmatpush.bf16.msra.mxu0 %v638
    %714 = vmatpush.bf16.msra.mxu0 %v636
    %715 = vmatpush.bf16.msra.mxu0 %v634
    %716 = vmatpush.bf16.msra.mxu0 %v632
    %717 = vmatpush.bf16.msra.mxu0 %v630
    %718 = vmatpush.bf16.msra.mxu0 %v628
    %719 = vmatpush.bf16.msra.mxu0 %v626
    %720 = vmatmul.bf16.gmra.mxu0 %v474
    %v721 = vpop.f32.mrf.mxu0
    %v722 = vadd.f32 %v709, %v721
    %v723 = vpop.f32.mrf.mxu0
    %724 = vdwg.mxu0
    %v725 = vadd.f32 %v696, 3.0
    %v726 = vadd.f32 %v722, 3.0
    %v727 = vmax.f32 %v725, 0.0
    %v728 = vmax.f32 %v726, 0.0
    %v729 = vmin.f32 %v727, 6.0
    %v730 = vmin.f32 %v728, 6.0
    %v731 = vmul.f32 %v696, %v729
    %v732 = vmul.f32 %v722, %v730
    %v733 = vmul.f32 %v731, 0.16666667
    %v734 = vmul.f32 %v732, 0.16666667
    %v735 = vpack.c.bf16 %v733, %v733
    %v736 = vpack.c.bf16 %v734, %v734
    %v737 = vld [vmem:[#allocation14] sm:$0xf]
    %v738 = vld [vmem:[#allocation14 + $0x4] sm:$0xf]
    %v739 = vld [vmem:[#allocation14 + $0x8] sm:$0xf]
    %v740 = vld [vmem:[#allocation14 + $0xc] sm:$0xf]
    %v741 = vld [vmem:[#allocation14 + $0x10] sm:$0xf]
    %v742 = vld [vmem:[#allocation14 + $0x14] sm:$0xf]
    %v743 = vld [vmem:[#allocation14 + $0x18] sm:$0xf]
    %v744 = vld [vmem:[#allocation14 + $0x1c] sm:$0xf]
    %v745 = vld [vmem:[#allocation14 + $0x20] sm:$0xf]
    %v746 = vld [vmem:[#allocation14 + $0x24] sm:$0xf]
    %v747 = vld [vmem:[#allocation14 + $0x28] sm:$0xf]
    %v748 = vld [vmem:[#allocation14 + $0x2c] sm:$0xf]
    %v749 = vld [vmem:[#allocation14 + $0x30] sm:$0xf]
    %v750 = vld [vmem:[#allocation14 + $0x34] sm:$0xf]
    %v751 = vld [vmem:[#allocation14 + $0x38] sm:$0xf]
    %v752 = vld [vmem:[#allocation14 + $0x3c] sm:$0xf]
    %v753 = vld [vmem:[#allocation14 + $0x40] sm:$0xf]
    %v754 = vld [vmem:[#allocation14 + $0x44] sm:$0xf]
    %v755 = vld [vmem:[#allocation14 + $0x48] sm:$0xf]
    %v756 = vld [vmem:[#allocation14 + $0x4c] sm:$0xf]
    %v757 = vld [vmem:[#allocation14 + $0x50] sm:$0xf]
    %v758 = vld [vmem:[#allocation14 + $0x54] sm:$0xf]
    %v759 = vld [vmem:[#allocation14 + $0x58] sm:$0xf]
    %v760 = vld [vmem:[#allocation14 + $0x5c] sm:$0xf]
    %v761 = vld [vmem:[#allocation14 + $0x60] sm:$0xf]
    %v762 = vld [vmem:[#allocation14 + $0x64] sm:$0xf]
    %v763 = vld [vmem:[#allocation14 + $0x68] sm:$0xf]
    %v764 = vld [vmem:[#allocation14 + $0x6c] sm:$0xf]
    %v765 = vld [vmem:[#allocation14 + $0x70] sm:$0xf]
    %v766 = vld [vmem:[#allocation14 + $0x74] sm:$0xf]
    %v767 = vld [vmem:[#allocation14 + $0x78] sm:$0xf]
    %v768 = vld [vmem:[#allocation14 + $0x7c] sm:$0xf]
    %v769 = vld [vmem:[#allocation16] sm:$0x1]
    %v771 = vperm.slane %v769, 0
    %v805 = vunpack.c.l.b16 %v737
    %v806 = vunpack.c.l.b16 %v738
    %v807 = vunpack.c.l.b16 %v739
    %v808 = vunpack.c.l.b16 %v740
    %v809 = vunpack.c.l.b16 %v741
    %v810 = vunpack.c.l.b16 %v742
    %v811 = vunpack.c.l.b16 %v743
    %v812 = vunpack.c.l.b16 %v744
    %v813 = vunpack.c.l.b16 %v745
    %v814 = vunpack.c.l.b16 %v746
    %v815 = vunpack.c.l.b16 %v747
    %v816 = vunpack.c.l.b16 %v748
    %v817 = vunpack.c.l.b16 %v749
    %v818 = vunpack.c.l.b16 %v750
    %v819 = vunpack.c.l.b16 %v751
    %v820 = vunpack.c.l.b16 %v752
    %v821 = vunpack.c.l.b16 %v753
    %v822 = vunpack.c.l.b16 %v754
    %v823 = vunpack.c.l.b16 %v755
    %v824 = vunpack.c.l.b16 %v756
    %v825 = vunpack.c.l.b16 %v757
    %v826 = vunpack.c.l.b16 %v758
    %v827 = vunpack.c.l.b16 %v759
    %v828 = vunpack.c.l.b16 %v760
    %v829 = vunpack.c.l.b16 %v761
    %v830 = vunpack.c.l.b16 %v762
    %v831 = vunpack.c.l.b16 %v763
    %v832 = vunpack.c.l.b16 %v764
    %v833 = vunpack.c.l.b16 %v765
    %v834 = vunpack.c.l.b16 %v766
    %v835 = vunpack.c.l.b16 %v767
    %v836 = vunpack.c.l.b16 %v768
    %v837 = vpack.c.b16 %v806, %v805
    %v838 = vpack.c.b16 %v808, %v807
    %v839 = vpack.c.b16 %v810, %v809
    %v840 = vpack.c.b16 %v812, %v811
    %v841 = vpack.c.b16 %v814, %v813
    %v842 = vpack.c.b16 %v816, %v815
    %v843 = vpack.c.b16 %v818, %v817
    %v844 = vpack.c.b16 %v820, %v819
    %v845 = vpack.c.b16 %v822, %v821
    %v846 = vpack.c.b16 %v824, %v823
    %v847 = vpack.c.b16 %v826, %v825
    %v848 = vpack.c.b16 %v828, %v827
    %v849 = vpack.c.b16 %v830, %v829
    %v850 = vpack.c.b16 %v832, %v831
    %v851 = vpack.c.b16 %v834, %v833
    %v852 = vpack.c.b16 %v836, %v835
    %869 = vmatpush.bf16.msra.mxu0 %v844
    %870 = vmatpush.bf16.msra.mxu0 %v843
    %871 = vmatpush.bf16.msra.mxu0 %v842
    %872 = vmatpush.bf16.msra.mxu0 %v841
    %873 = vmatpush.bf16.msra.mxu0 %v840
    %874 = vmatpush.bf16.msra.mxu0 %v839
    %875 = vmatpush.bf16.msra.mxu0 %v838
    %876 = vmatpush.bf16.msra.mxu0 %v837
    %877 = vmatmul.bf16.gmra.mxu0 %v735
    %v878 = vpop.f32.mrf.mxu0
    %v879 = vadd.f32 %v771, %v878
    %v880 = vpop.f32.mrf.mxu0
    %881 = vdwg.mxu0
    %882 = vmatpush.bf16.msra.mxu0 %v852
    %883 = vmatpush.bf16.msra.mxu0 %v851
    %884 = vmatpush.bf16.msra.mxu0 %v850
    %885 = vmatpush.bf16.msra.mxu0 %v849
    %886 = vmatpush.bf16.msra.mxu0 %v848
    %887 = vmatpush.bf16.msra.mxu0 %v847
    %888 = vmatpush.bf16.msra.mxu0 %v846
    %889 = vmatpush.bf16.msra.mxu0 %v845
    %890 = vmatmul.bf16.gmra.mxu0 %v736
    %v891 = vpop.f32.mrf.mxu0
    %v892 = vadd.f32 %v879, %v891
    %v893 = vpop.f32.mrf.mxu0
    %894 = vdwg.mxu0
    %v895 = vtanh.pop %v892
    %v896 = vld [vmem:[%s9] sm:$0xff]
    %v897 = vadd.f32 %v895, %v896
    %v898 = vmax.f32 %v897, -1.0
    %v899 = vmin.f32 %v898, 1.0
    %900 = vst [vmem:[#allocation17] sm:$0xff] %v899
    // Predicated region
    $region78: #{tpu_custom_call.1} parent=1 // pred_check
      _
    $region79: #{tpu_custom_call.1} parent=1 // pred_check_branch
      %902 = sbr.rel (0) target = $region81
    $region80: #{tpu_custom_call.1} parent=1 // pred_region
      %904 = vsyncadd [#allocation4], 0
      %s906 = sshll.u32 [#allocation17], 4
      %s907 = int_to_ptr.vmem [resolvable:$true] %s906
      %s908 = sshll.u32 %s10, 4
      %s909 = int_to_ptr.hbm [resolvable:$true] %s908
      %911 = dma.vmem_to_hbm [thread:$0]  %s907, 128, %s909, [#allocation4]
    $region81: #{tpu_custom_call.1} parent=1 // pred_fallthru
      _
    // Predicated region
    $region82: #{tpu_custom_call.1} parent=1 // pred_check
      _
    $region83: #{tpu_custom_call.1} parent=1 // pred_check_branch
      %913 = sbr.rel (0) target = $region85
    $region84: #{tpu_custom_call.1} parent=1 // pred_region
      %915 = dma.done [#allocation4], 128
    $region85: #{tpu_custom_call.1} parent=1 // pred_fallthru
      _
    %916 = vsyncpa [#allocation3], 1
    %917 = vsyncpa [#allocation6], 1
    %918 = vsyncpa [#allocation9], 1
    %919 = vsyncpa [#allocation12], 1
    %920 = vsyncpa [#allocation15], 1
    %921 = vsyncpa [#allocation4], 1

</llo_original>
